<compile_context>
chip_gen: v6e
topology: v6e:2x2x1
jax: 0.10.0
libtpu: 0.0.40
codegen_flags: <defaults>
</compile_context>

<pallas_src>
import jax
import jax.numpy as jnp
from jax import lax
from jax.experimental import pallas as pl
from jax.experimental.pallas import tpu as pltpu

TEMPERATURE = 0.5


def _ntxent_kernel(zq_ref, zk_ref, zp_ref, out_ref, zq_scr, m_scr, l_scr):
    q_idx = pl.program_id(0)
    k_idx = pl.program_id(1)
    nk = pl.num_programs(1)

    inv_t = jnp.float32(1.0 / TEMPERATURE)

    def _l2norm(v):
        v = v.astype(jnp.float32)
        nrm2 = jnp.sum(v * v, axis=-1, keepdims=True)
        # torch.nn.functional.normalize: v / max(||v||, 1e-12)
        inv = jnp.where(nrm2 > jnp.float32(1e-24), lax.rsqrt(nrm2),
                        jnp.float32(1e12))
        return v * inv

    @pl.when(k_idx == 0)
    def _init():
        # Normalize the query rows once per row tile; fold 1/T in here so the
        # (tq, tk) similarity block needs no post-scale.
        zq_scr[...] = _l2norm(zq_ref[...]) * inv_t
        m_scr[...] = jnp.full_like(m_scr, -jnp.inf)
        l_scr[...] = jnp.zeros_like(l_scr)

    zq = zq_scr[...]                       # (tq, D), already scaled by 1/T
    zk = _l2norm(zk_ref[...])              # (tk, D)

    # (tq, tk) similarity block; contract D on both operands (no transpose).
    s = lax.dot_general(zq, zk, (((1,), (1,)), ((), ())),
                        preferred_element_type=jnp.float32)

    tq, tk = s.shape
    # Mask the global diagonal (self-similarity) with one small iota.
    row_ids = q_idx * tq + lax.broadcasted_iota(jnp.int32, (tq, 1), 0)
    col_ids = k_idx * tk + lax.broadcasted_iota(jnp.int32, (tq, tk), 1)
    s = jnp.where(col_ids == row_ids, jnp.float32(-1e30), s)

    # Online (flash-style) log-sum-exp over key tiles.
    m_prev = m_scr[...]
    m_new = jnp.maximum(m_prev, jnp.max(s, axis=-1, keepdims=True))
    alpha = jnp.exp(m_prev - m_new)
    l_scr[...] = alpha * l_scr[...] + jnp.sum(jnp.exp(s - m_new), axis=-1,
                                              keepdims=True)
    m_scr[...] = m_new

    @pl.when(k_idx == nk - 1)
    def _finalize():
        # Positives: row-wise dot of the paired views (1/T already in zq).
        zp = _l2norm(zp_ref[...])
        pos = jnp.sum(zq * zp, axis=-1, keepdims=True)
        lse = m_scr[...] + jnp.log(l_scr[...])
        out_ref[...] = lse - pos


def nt_xent_loss(x, y, *, block_q=None, block_k=None):
    x = jnp.asarray(x)
    y = jnp.asarray(y)
    n, d = x.shape
    assert y.shape == (n, d)
    assert n % 8 == 0, "batch size must be a multiple of 8 (TPU sublane tiling)"
    n2 = 2 * n

    # Stack the two views once; this is pure layout plumbing (O(N*D)).
    z = jnp.concatenate([x, y], axis=0)    # (2N, D)

    def _pick(cap, size):
        for c in (cap, 512, 256, 128, 64, 32, 16, 8):
            if c <= size and size % c == 0:
                return c
        return size

    tq = block_q if block_q is not None else _pick(256, n)
    tk = block_k if block_k is not None else _pick(512, n2)
    assert n % tq == 0 and n2 % tk == 0, (tq, tk, n)

    n_q_tiles = n2 // tq
    half_tiles = n // tq
    n_k_tiles = n2 // tk

    cost = pl.CostEstimate(
        flops=int(2.0 * n2 * n2 * d + 8.0 * n2 * n2),
        transcendentals=int(n2 * n2 + 4 * n2),
        bytes_accessed=int(3 * n2 * d * 4 + n2 * 4),
    )

    per_row = pl.pallas_call(
        _ntxent_kernel,
        out_shape=jax.ShapeDtypeStruct((n2, 1), jnp.float32),
        grid_spec=pltpu.PrefetchScalarGridSpec(
            num_scalar_prefetch=0,
            grid=(n_q_tiles, n_k_tiles),
            in_specs=[
                # query rows of z
                pl.BlockSpec((tq, d), lambda i, k: (i, 0)),
                # key rows of z (reduction axis)
                pl.BlockSpec((tk, d), lambda i, k: (k, 0)),
                # paired rows of z (positive for each query row)
                pl.BlockSpec((tq, d),
                             lambda i, k: ((i + half_tiles) % n_q_tiles, 0)),
            ],
            out_specs=pl.BlockSpec((tq, 1), lambda i, k: (i, 0)),
            scratch_shapes=[
                pltpu.VMEM((tq, d), jnp.float32),   # normalized query tile
                pltpu.VMEM((tq, 1), jnp.float32),   # running max m_i
                pltpu.VMEM((tq, 1), jnp.float32),   # running sum l_i
            ],
        ),
        compiler_params=pltpu.CompilerParams(
            dimension_semantics=("parallel", "arbitrary")),
        cost_estimate=cost,
    )(z, z, z)

    return jnp.mean(per_row[:, 0])


class NTXLoss:
    """JAX/Pallas port of the PyTorch NTXLoss module (temperature fixed to 0.5)."""

    def __init__(self, temperature=0.5):
        self.temperature = 0.5  # the PyTorch __init__ ignores the argument

    def __call__(self, x, y):
        return nt_xent_loss(x, y)


def _reference_nt_xent(x, y, temperature=TEMPERATURE):
    """Pure-JAX reference for a sanity check."""
    def _l2norm(v):
        return v / jnp.maximum(jnp.linalg.norm(v, axis=-1, keepdims=True), 1e-12)

    n = x.shape[0]
    z = jnp.concatenate([_l2norm(x), _l2norm(y)], axis=0)
    sim = (z @ z.T) / temperature
    n2 = 2 * n
    diag = jnp.eye(n2, dtype=bool)
    sim_nd = jnp.where(diag, -1e30, sim)
    lse = jax.scipy.special.logsumexp(sim_nd, axis=-1)
    pos_idx = (jnp.arange(n2) + n) % n2
    pos = sim[jnp.arange(n2), pos_idx]
    return jnp.mean(lse - pos)


if __name__ == "__main__":
    # Small shape consistent with the module (a batch of paired embeddings).
    key = jax.random.PRNGKey(0)
    kx, ky = jax.random.split(key)
    N, D = 8, 32
    x = jax.random.normal(kx, (N, D), dtype=jnp.float32)
    y = jax.random.normal(ky, (N, D), dtype=jnp.float32)

    loss_mod = NTXLoss(temperature=0.5)
    loss = jax.block_until_ready(loss_mod(x, y))
    ref = jax.block_until_ready(_reference_nt_xent(x, y))
    assert jnp.isfinite(loss), "loss is not finite"
    assert jnp.allclose(loss, ref, rtol=1e-5, atol=1e-5), (loss, ref)

    # Slightly larger case with explicit small tiles to exercise the
    # multi-tile online-LSE path and the paired-block index map.
    kx2, ky2 = jax.random.split(jax.random.PRNGKey(1))
    N2, D2 = 64, 32
    x2 = jax.random.normal(kx2, (N2, D2), dtype=jnp.float32)
    y2 = jax.random.normal(ky2, (N2, D2), dtype=jnp.float32)
    loss2 = jax.block_until_ready(nt_xent_loss(x2, y2, block_q=16, block_k=32))
    ref2 = jax.block_until_ready(_reference_nt_xent(x2, y2))
    assert jnp.allclose(loss2, ref2, rtol=1e-5, atol=1e-5), (loss2, ref2)

    print("KERNEL_OK")
</pallas_src>

<mosaic_0001>
module attributes {stable_mosaic.version = 11 : i64} {
  func.func @_ntxent_kernel(%arg0: i32, %arg1: i32, %arg2: memref<8x32xf32, #tpu.memory_space<vmem>>, %arg3: memref<16x32xf32, #tpu.memory_space<vmem>>, %arg4: memref<8x32xf32, #tpu.memory_space<vmem>>, %arg5: memref<8x1xf32, #tpu.memory_space<vmem>>, %arg6: memref<8x32xf32, #tpu.memory_space<vmem>>, %arg7: memref<8x1xf32, #tpu.memory_space<vmem>>, %arg8: memref<8x1xf32, #tpu.memory_space<vmem>>) attributes {dimension_semantics = [#tpu.dimension_semantics<parallel>, #tpu.dimension_semantics<arbitrary>], iteration_bounds = array<i64: 2, 1>, scalar_prefetch = 0 : i64, scratch_operands = 3 : i64, tpu.core_type = #tpu.core_type<tc>, window_params = [{transform_indices = @transform_0, window_bounds = array<i64: 8, 32>}, {transform_indices = @transform_1, window_bounds = array<i64: 16, 32>}, {transform_indices = @transform_2, window_bounds = array<i64: 8, 32>}, {transform_indices = @transform_3, window_bounds = array<i64: 8, 1>}]} {
    %c0_i32 = arith.constant 0 : i32
    %0 = arith.cmpi eq, %arg1, %c0_i32 : i32
    %1 = arith.extui %0 : i1 to i32
    %cst = arith.constant 2.000000e+00 : f32
    %c0_i32_0 = arith.constant 0 : i32
    %2 = arith.cmpi ne, %1, %c0_i32_0 : i32
    scf.if %2 {
      %c0_21 = arith.constant 0 : index
      %c0_22 = arith.constant 0 : index
      %47 = vector.load %arg2[%c0_21, %c0_22] : memref<8x32xf32, #tpu.memory_space<vmem>>, vector<8x32xf32>
      %48 = arith.mulf %47, %47 : vector<8x32xf32>
      %cst_23 = arith.constant dense<0.000000e+00> : vector<8xf32>
      %49 = vector.multi_reduction <add>, %48, %cst_23 [1] : vector<8x32xf32> to vector<8xf32>
      %50 = vector.shape_cast %49 : vector<8xf32> to vector<8x1xf32>
      %cst_24 = arith.constant 1.000000e-24 : f32
      %51 = vector.broadcast %cst_24 : f32 to vector<8x1xf32>
      %52 = arith.cmpf ogt, %50, %51 : vector<8x1xf32>
      %53 = math.rsqrt %50 : vector<8x1xf32>
      %cst_25 = arith.constant 9.99999995E+11 : f32
      %54 = vector.broadcast %cst_25 : f32 to vector<8x1xf32>
      %55 = arith.select %52, %53, %54 : vector<8x1xi1>, vector<8x1xf32>
      %56 = vector.broadcast %55 : vector<8x1xf32> to vector<8x32xf32>
      %57 = arith.mulf %47, %56 : vector<8x32xf32>
      %58 = vector.broadcast %cst : f32 to vector<8x32xf32>
      %59 = arith.mulf %57, %58 : vector<8x32xf32>
      %c0_26 = arith.constant 0 : index
      %c0_27 = arith.constant 0 : index
      %60 = vector.load %arg6[%c0_26, %c0_27] : memref<8x32xf32, #tpu.memory_space<vmem>>, vector<8x32xf32>
      tpu.vector_store %arg6[%c0_26, %c0_27], %59 {strides = array<i32>} : memref<8x32xf32, #tpu.memory_space<vmem>>, vector<8x32xf32>,
      %cst_28 = arith.constant 0xFF800000 : f32
      %61 = vector.broadcast %cst_28 : f32 to vector<8x1xf32>
      %c0_29 = arith.constant 0 : index
      %c0_30 = arith.constant 0 : index
      %62 = vector.load %arg7[%c0_29, %c0_30] : memref<8x1xf32, #tpu.memory_space<vmem>>, vector<8x1xf32>
      tpu.vector_store %arg7[%c0_29, %c0_30], %61 {strides = array<i32>} : memref<8x1xf32, #tpu.memory_space<vmem>>, vector<8x1xf32>,
      %cst_31 = arith.constant 0.000000e+00 : f32
      %63 = vector.broadcast %cst_31 : f32 to vector<8x1xf32>
      %c0_32 = arith.constant 0 : index
      %c0_33 = arith.constant 0 : index
      %64 = vector.load %arg8[%c0_32, %c0_33] : memref<8x1xf32, #tpu.memory_space<vmem>>, vector<8x1xf32>
      tpu.vector_store %arg8[%c0_32, %c0_33], %63 {strides = array<i32>} : memref<8x1xf32, #tpu.memory_space<vmem>>, vector<8x1xf32>,
    } else {
    }
    %c0 = arith.constant 0 : index
    %c0_1 = arith.constant 0 : index
    %3 = vector.load %arg6[%c0, %c0_1] : memref<8x32xf32, #tpu.memory_space<vmem>>, vector<8x32xf32>
    %c0_2 = arith.constant 0 : index
    %c0_3 = arith.constant 0 : index
    %4 = vector.load %arg3[%c0_2, %c0_3] : memref<16x32xf32, #tpu.memory_space<vmem>>, vector<16x32xf32>
    %5 = arith.mulf %4, %4 : vector<16x32xf32>
    %cst_4 = arith.constant dense<0.000000e+00> : vector<16xf32>
    %6 = vector.multi_reduction <add>, %5, %cst_4 [1] : vector<16x32xf32> to vector<16xf32>
    %7 = vector.shape_cast %6 : vector<16xf32> to vector<16x1xf32>
    %cst_5 = arith.constant 1.000000e-24 : f32
    %8 = vector.broadcast %cst_5 : f32 to vector<16x1xf32>
    %9 = arith.cmpf ogt, %7, %8 : vector<16x1xf32>
    %10 = math.rsqrt %7 : vector<16x1xf32>
    %cst_6 = arith.constant 9.99999995E+11 : f32
    %11 = vector.broadcast %cst_6 : f32 to vector<16x1xf32>
    %12 = arith.select %9, %10, %11 : vector<16x1xi1>, vector<16x1xf32>
    %13 = vector.broadcast %12 : vector<16x1xf32> to vector<16x32xf32>
    %14 = arith.mulf %4, %13 : vector<16x32xf32>
    %cst_7 = arith.constant dense<0.000000e+00> : vector<8x16xf32>
    %15 = tpu.matmul %3, %14, %cst_7 {dimension_numbers = #tpu.dot_dimension_numbers<[1], [1], [0], [0], [0, 0, 1, 0], [], []>} : vector<8x32xf32>, vector<16x32xf32>, vector<8x16xf32> -> vector<8x16xf32>
    %c8_i32 = arith.constant 8 : i32
    %16 = arith.muli %arg0, %c8_i32 : i32
    %17 = tpu.iota {dimensions = array<i32: 0>} : vector<8x1xi32>
    %18 = vector.broadcast %16 : i32 to vector<8x1xi32>
    %19 = arith.addi %18, %17 : vector<8x1xi32>
    %c16_i32 = arith.constant 16 : i32
    %20 = arith.muli %arg1, %c16_i32 : i32
    %21 = tpu.iota {dimensions = array<i32: 1>} : vector<8x16xi32>
    %22 = vector.broadcast %20 : i32 to vector<8x16xi32>
    %23 = arith.addi %22, %21 : vector<8x16xi32>
    %24 = vector.broadcast %19 : vector<8x1xi32> to vector<8x16xi32>
    %25 = arith.cmpi eq, %23, %24 : vector<8x16xi32>
    %cst_8 = arith.constant -1.000000e+30 : f32
    %26 = vector.broadcast %cst_8 : f32 to vector<8x16xf32>
    %27 = arith.select %25, %26, %15 : vector<8x16xi1>, vector<8x16xf32>
    %c0_9 = arith.constant 0 : index
    %c0_10 = arith.constant 0 : index
    %28 = vector.load %arg7[%c0_9, %c0_10] : memref<8x1xf32, #tpu.memory_space<vmem>>, vector<8x1xf32>
    %cst_11 = arith.constant dense<0xFF800000> : vector<8xf32>
    %29 = vector.multi_reduction <maximumf>, %27, %cst_11 [1] : vector<8x16xf32> to vector<8xf32>
    %30 = vector.shape_cast %29 : vector<8xf32> to vector<8x1xf32>
    %31 = arith.maximumf %28, %30 : vector<8x1xf32>
    %32 = arith.subf %28, %31 : vector<8x1xf32>
    %33 = math.exp %32 : vector<8x1xf32>
    %c0_12 = arith.constant 0 : index
    %c0_13 = arith.constant 0 : index
    %34 = vector.load %arg8[%c0_12, %c0_13] : memref<8x1xf32, #tpu.memory_space<vmem>>, vector<8x1xf32>
    %35 = arith.mulf %33, %34 : vector<8x1xf32>
    %36 = vector.broadcast %31 : vector<8x1xf32> to vector<8x16xf32>
    %37 = arith.subf %27, %36 : vector<8x16xf32>
    %38 = math.exp %37 : vector<8x16xf32>
    %cst_14 = arith.constant dense<0.000000e+00> : vector<8xf32>
    %39 = vector.multi_reduction <add>, %38, %cst_14 [1] : vector<8x16xf32> to vector<8xf32>
    %40 = vector.shape_cast %39 : vector<8xf32> to vector<8x1xf32>
    %41 = arith.addf %35, %40 : vector<8x1xf32>
    %c0_15 = arith.constant 0 : index
    %c0_16 = arith.constant 0 : index
    %42 = vector.load %arg8[%c0_15, %c0_16] : memref<8x1xf32, #tpu.memory_space<vmem>>, vector<8x1xf32>
    tpu.vector_store %arg8[%c0_15, %c0_16], %41 {strides = array<i32>} : memref<8x1xf32, #tpu.memory_space<vmem>>, vector<8x1xf32>,
    %c0_17 = arith.constant 0 : index
    %c0_18 = arith.constant 0 : index
    %43 = vector.load %arg7[%c0_17, %c0_18] : memref<8x1xf32, #tpu.memory_space<vmem>>, vector<8x1xf32>
    tpu.vector_store %arg7[%c0_17, %c0_18], %31 {strides = array<i32>} : memref<8x1xf32, #tpu.memory_space<vmem>>, vector<8x1xf32>,
    %c0_i32_19 = arith.constant 0 : i32
    %44 = arith.cmpi eq, %arg1, %c0_i32_19 : i32
    %45 = arith.extui %44 : i1 to i32
    %c0_i32_20 = arith.constant 0 : i32
    %46 = arith.cmpi ne, %45, %c0_i32_20 : i32
    scf.if %46 {
      %c0_21 = arith.constant 0 : index
      %c0_22 = arith.constant 0 : index
      %47 = vector.load %arg4[%c0_21, %c0_22] : memref<8x32xf32, #tpu.memory_space<vmem>>, vector<8x32xf32>
      %48 = arith.mulf %47, %47 : vector<8x32xf32>
      %cst_23 = arith.constant dense<0.000000e+00> : vector<8xf32>
      %49 = vector.multi_reduction <add>, %48, %cst_23 [1] : vector<8x32xf32> to vector<8xf32>
      %50 = vector.shape_cast %49 : vector<8xf32> to vector<8x1xf32>
      %cst_24 = arith.constant 1.000000e-24 : f32
      %51 = vector.broadcast %cst_24 : f32 to vector<8x1xf32>
      %52 = arith.cmpf ogt, %50, %51 : vector<8x1xf32>
      %53 = math.rsqrt %50 : vector<8x1xf32>
      %cst_25 = arith.constant 9.99999995E+11 : f32
      %54 = vector.broadcast %cst_25 : f32 to vector<8x1xf32>
      %55 = arith.select %52, %53, %54 : vector<8x1xi1>, vector<8x1xf32>
      %56 = vector.broadcast %55 : vector<8x1xf32> to vector<8x32xf32>
      %57 = arith.mulf %47, %56 : vector<8x32xf32>
      %58 = arith.mulf %3, %57 : vector<8x32xf32>
      %cst_26 = arith.constant dense<0.000000e+00> : vector<8xf32>
      %59 = vector.multi_reduction <add>, %58, %cst_26 [1] : vector<8x32xf32> to vector<8xf32>
      %60 = vector.shape_cast %59 : vector<8xf32> to vector<8x1xf32>
      %c0_27 = arith.constant 0 : index
      %c0_28 = arith.constant 0 : index
      %61 = vector.load %arg7[%c0_27, %c0_28] : memref<8x1xf32, #tpu.memory_space<vmem>>, vector<8x1xf32>
      %c0_29 = arith.constant 0 : index
      %c0_30 = arith.constant 0 : index
      %62 = vector.load %arg8[%c0_29, %c0_30] : memref<8x1xf32, #tpu.memory_space<vmem>>, vector<8x1xf32>
      %63 = math.log %62 : vector<8x1xf32>
      %64 = arith.addf %61, %63 : vector<8x1xf32>
      %65 = arith.subf %64, %60 : vector<8x1xf32>
      %c0_31 = arith.constant 0 : index
      %c0_32 = arith.constant 0 : index
      %66 = vector.load %arg5[%c0_31, %c0_32] : memref<8x1xf32, #tpu.memory_space<vmem>>, vector<8x1xf32>
      tpu.vector_store %arg5[%c0_31, %c0_32], %65 {strides = array<i32>} : memref<8x1xf32, #tpu.memory_space<vmem>>, vector<8x1xf32>,
    } else {
    }
    return
  }
  func.func @transform_0(%arg0: i32, %arg1: i32) -> (i32, i32) {
    %c0_i32 = arith.constant 0 : i32
    %c0_i32_0 = arith.constant 0 : i32
    return %arg0, %c0_i32 : i32, i32
  }
  func.func @transform_1(%arg0: i32, %arg1: i32) -> (i32, i32) {
    %c0_i32 = arith.constant 0 : i32
    %c0_i32_0 = arith.constant 0 : i32
    return %arg1, %c0_i32 : i32, i32
  }
  func.func @transform_2(%arg0: i32, %arg1: i32) -> (i32, i32) {
    %c1_i32 = arith.constant 1 : i32
    %0 = arith.addi %arg0, %c1_i32 : i32
    %c2_i32 = arith.constant 2 : i32
    %c0_i32 = arith.constant 0 : i32
    %1 = arith.cmpi eq, %c2_i32, %c0_i32 : i32
    %c1_i32_0 = arith.constant 1 : i32
    %2 = arith.select %1, %c1_i32_0, %c2_i32 : i32
    %3 = arith.remsi %0, %2 : i32
    %c0_i32_1 = arith.constant 0 : i32
    %4 = arith.cmpi ne, %3, %c0_i32_1 : i32
    %c0_i32_2 = arith.constant 0 : i32
    %5 = arith.cmpi slt, %3, %c0_i32_2 : i32
    %c0_i32_3 = arith.constant 0 : i32
    %6 = arith.cmpi slt, %2, %c0_i32_3 : i32
    %7 = arith.xori %5, %6 : i1
    %8 = arith.andi %7, %4 : i1
    %9 = arith.addi %3, %2 : i32
    %10 = arith.select %8, %9, %3 : i32
    %c0_i32_4 = arith.constant 0 : i32
    %c0_i32_5 = arith.constant 0 : i32
    return %10, %c0_i32_4 : i32, i32
  }
  func.func @transform_3(%arg0: i32, %arg1: i32) -> (i32, i32) {
    %c0_i32 = arith.constant 0 : i32
    %c0_i32_0 = arith.constant 0 : i32
    return %arg0, %c0_i32 : i32, i32
  }
}

</mosaic_0001>

<llo_original>
// kernel: tpu_custom_call.1
$region0: #{tpu_custom_call.1}
  #allocation0 [shape = 'u32[]', space=smem, size = 0x4, offset = 0x4, fixed_abs, tag = 'smem constant byte address 0x4 - core index']
  #allocation1 [shape = 'u32[144,128]{1,0:T(1,128)}', space=vmem, size = 0x12000, scoped, tag = 'internal scratch']
  #allocation2 [shape = 'f32[8,32]{1,0:T(8,128)}', space=vmem, size = 0x1000, scoped, tag = 'scratch operand']
  #allocation3 [shape = 'f32[8,1]{1,0:T(8,128)}', space=vmem, size = 0x1000, scoped, tag = 'scratch operand']
  #allocation4 [shape = 'f32[8,1]{1,0:T(8,128)}', space=vmem, size = 0x1000, scoped, tag = 'scratch operand']
  %s0 = inlined_call_operand.hbm [shape: f32[16,32], index: 0, kind: input, shape index: {}]
  %s1 = inlined_call_operand.hbm [shape: f32[16,32], index: 1, kind: input, shape index: {}]
  %s2 = inlined_call_operand.hbm [shape: f32[16,32], index: 2, kind: input, shape index: {}]
  %s3 = inlined_call_operand.vmem [shape: f32[16,1], index: 3, kind: output, shape index: {}]
  %s4 = sld [smem:[#allocation0]]
  $region65: #{tpu_custom_call.1} parent=0
    _
  %s6 = ssub.s32 1, %s4
  %s7 = scalar_select 0, %s6, %s4
  $region1: #{tpu_custom_call.1} parent=0
    #allocation5 [shape = 'u8[8192]{0}', space=vmem, size = 0x2000, scoped, tag = 'input window, operand 0']
    #allocation6 [shape = 's32[2]{0}', space=sflag, size = 0x8, scoped, tag = 'scoped memory for tpu_custom_call.1']
    #allocation7 [shape = 'u8[8192]{0}', space=vmem, size = 0x2000, scoped, tag = 'input window, operand 1, single buffered']
    #allocation8 [shape = 's32[1]{0}', space=sflag, size = 0x4, scoped, tag = 'scoped memory for tpu_custom_call.1']
    #allocation9 [shape = 'u8[8192]{0}', space=vmem, size = 0x2000, scoped, tag = 'input window, operand 2']
    %8 = vsyncpa [#allocation6], 0
    %s9 = scalar_lea.sflag [#allocation6], 1
    %10 = vsyncpa %s9, 0
    %11 = vsyncpa [#allocation8], 0
    loop: start=0, step=1, limit=4
    $region2: #{tpu_custom_call.1} parent=1 // loop_pre_header
      _
    $region3: #{tpu_custom_call.1} parent=1 // loop_header
      %s13 = sphi 0, %s17
      %p14 = scmp.ge.s32.totalorder %s13, 4
      %s20 = sphi 0, %s32
      %s21 = sphi 0, %s28
      %s22 = sphi 0, %s20
      %s23 = sphi 0, %s21
      %s24 = sphi 0, %s22
      %s25 = sphi 0, %s23
      %s35 = sphi 0, %s37
      %s38 = sphi 0, %s35
      %s39 = sphi 0, %s38
      %s55 = sphi 0, %s39
      %s61 = sphi 0, %s63
      %s64 = sphi 0, %s61
      %s65 = sphi 0, %s64
      %s81 = sphi 0, %s65
      %s113 = sphi 0, %s115
      %s116 = sphi 0, %s113
      %s117 = sphi 0, %s116
      %s133 = sphi 0, %s117
      %s139 = sphi 0, %s141
      %s142 = sphi 0, %s139
      %s143 = sphi 0, %s142
      %s159 = sphi 0, %s143
    $region4: #{tpu_custom_call.1} parent=1 // loop_header_branch
      %16 = sbr.rel (%p14) target = $region8
    $region5: #{tpu_custom_call.1} parent=1 // loop_body
      %s18 = ssub.s32 %s13, 1
      %s19 = ssub.s32 %s13, 2
      %s26 = sadd.s32 1, %s21
      %p27 = scmp.ge.s32.totalorder %s26, 1
      %s28 = scalar_select %p27, 0, %s26
      %s29 = sadd.s32 1, %s20
      %s30 = scalar_select %p27, %s29, %s20
      %p31 = scmp.ge.s32.totalorder %s30, 2
      %s32 = scalar_select %p31, 0, %s30
      %s33 = ssub.s32 %s20, %s32
      %p34 = scmp.eq.s32.totalorder %s33, 0
      %s36 = sadd.s32 %s35, 1
      %s37 = scalar_select %p34, %s35, %s36
      %p40 = pneg %p34
      %p41 = scmp.eq.s32.totalorder %s13, 1
      %p42 = por %p40, %p41
      %p43 = scmp.ne.s32.totalorder %s35, %s38
      %p44 = scmp.eq.s32.totalorder %s13, 0
      %p45 = por %p43, %p44
      %p46 = scmp.ne.s32.totalorder %s35, %s38
      %p47 = scmp.eq.s32.totalorder %s18, 1
      %p48 = por %p46, %p47
      %p49 = scmp.ne.s32.totalorder %s38, %s39
      %p50 = scmp.eq.s32.totalorder %s18, 0
      %p51 = por %p49, %p50
      %p52 = scmp.ne.s32.totalorder %s38, %s39
      %p53 = scmp.eq.s32.totalorder %s19, 1
      %p54 = por %p52, %p53
      %p56 = scmp.ne.s32.totalorder %s39, %s55
      %p57 = scmp.eq.s32.totalorder %s19, 0
      %p58 = por %p56, %p57
      %s59 = ssub.s32 %s21, %s28
      %p60 = scmp.eq.s32.totalorder %s59, 0
      %s62 = sadd.s32 %s61, 1
      %s63 = scalar_select %p60, %s61, %s62
      %p66 = pneg %p60
      %p67 = scmp.eq.s32.totalorder %s13, 1
      %p68 = por %p66, %p67
      %p69 = scmp.ne.s32.totalorder %s61, %s64
      %p70 = scmp.eq.s32.totalorder %s13, 0
      %p71 = por %p69, %p70
      %p72 = scmp.ne.s32.totalorder %s61, %s64
      %p73 = scmp.eq.s32.totalorder %s18, 1
      %p74 = por %p72, %p73
      %p75 = scmp.ne.s32.totalorder %s64, %s65
      %p76 = scmp.eq.s32.totalorder %s18, 0
      %p77 = por %p75, %p76
      %p78 = scmp.ne.s32.totalorder %s64, %s65
      %p79 = scmp.eq.s32.totalorder %s19, 1
      %p80 = por %p78, %p79
      %p82 = scmp.ne.s32.totalorder %s65, %s81
      %p83 = scmp.eq.s32.totalorder %s19, 0
      %p84 = por %p82, %p83
      %s85 = sadd.s32 %s20, 1
      %p86 = scmp.lt.s32.totalorder %s85, 0
      %s87 = ssub.s32 0, %s85
      %s88 = scalar_select %p86, %s87, %s85
      %s89 = sand.u32 %s88, 1
      %s90 = ssub.s32 0, %s89
      %s91 = scalar_select %p86, %s90, %s89
      %p92 = scmp.ne.s32.totalorder %s91, 0
      %p93 = scmp.lt.s32.totalorder %s91, 0
      %p94 = pnand %p93, %p92
      %p95 = pneg %p94
      %s96 = sadd.s32 %s91, 2
      %s97 = scalar_select %p95, %s96, %s91
      %s98 = sadd.s32 %s32, 1
      %p99 = scmp.lt.s32.totalorder %s98, 0
      %s100 = ssub.s32 0, %s98
      %s101 = scalar_select %p99, %s100, %s98
      %s102 = sand.u32 %s101, 1
      %s103 = ssub.s32 0, %s102
      %s104 = scalar_select %p99, %s103, %s102
      %p105 = scmp.ne.s32.totalorder %s104, 0
      %p106 = scmp.lt.s32.totalorder %s104, 0
      %p107 = pnand %p106, %p105
      %p108 = pneg %p107
      %s109 = sadd.s32 %s104, 2
      %s110 = scalar_select %p108, %s109, %s104
      %s111 = ssub.s32 %s97, %s110
      %p112 = scmp.eq.s32.totalorder %s111, 0
      %s114 = sadd.s32 %s113, 1
      %s115 = scalar_select %p112, %s113, %s114
      %p118 = pneg %p112
      %p119 = scmp.eq.s32.totalorder %s13, 1
      %p120 = por %p118, %p119
      %p121 = scmp.ne.s32.totalorder %s113, %s116
      %p122 = scmp.eq.s32.totalorder %s13, 0
      %p123 = por %p121, %p122
      %p124 = scmp.ne.s32.totalorder %s113, %s116
      %p125 = scmp.eq.s32.totalorder %s18, 1
      %p126 = por %p124, %p125
      %p127 = scmp.ne.s32.totalorder %s116, %s117
      %p128 = scmp.eq.s32.totalorder %s18, 0
      %p129 = por %p127, %p128
      %p130 = scmp.ne.s32.totalorder %s116, %s117
      %p131 = scmp.eq.s32.totalorder %s19, 1
      %p132 = por %p130, %p131
      %p134 = scmp.ne.s32.totalorder %s117, %s133
      %p135 = scmp.eq.s32.totalorder %s19, 0
      %p136 = por %p134, %p135
      %s137 = ssub.s32 %s20, %s32
      %p138 = scmp.eq.s32.totalorder %s137, 0
      %s140 = sadd.s32 %s139, 1
      %s141 = scalar_select %p138, %s139, %s140
      %p144 = pneg %p138
      %p145 = scmp.eq.s32.totalorder %s13, 1
      %p146 = por %p144, %p145
      %p147 = scmp.ne.s32.totalorder %s139, %s142
      %p148 = scmp.eq.s32.totalorder %s13, 0
      %p149 = por %p147, %p148
      %p150 = scmp.ne.s32.totalorder %s139, %s142
      %p151 = scmp.eq.s32.totalorder %s18, 1
      %p152 = por %p150, %p151
      %p153 = scmp.ne.s32.totalorder %s142, %s143
      %p154 = scmp.eq.s32.totalorder %s18, 0
      %p155 = por %p153, %p154
      %p156 = scmp.ne.s32.totalorder %s142, %s143
      %p157 = scmp.eq.s32.totalorder %s19, 1
      %p158 = por %p156, %p157
      %p160 = scmp.ne.s32.totalorder %s143, %s159
      %p161 = scmp.eq.s32.totalorder %s19, 0
      %p162 = por %p160, %p161
      %p163 = scmp.le.s32.totalorder 1, %s13
      %p164 = scmp.lt.s32.totalorder %s13, 3
      %p165 = pnand %p163, %p164
      %p166 = pneg %p165
      // Predicated region
      $region9: #{tpu_custom_call.1} parent=5 // pred_check
        _
      $region10: #{tpu_custom_call.1} parent=5 // pred_check_branch
        %168 = sbr.rel (%p165) target = $region12
      $region11: #{tpu_custom_call.1} parent=5 // pred_region
        %s169 = ssub.s32 %s13, 1
        // Predicated region
        $region13: #{tpu_custom_call.1} parent=11 // pred_check
          %p170 = pneg %p77
        $region14: #{tpu_custom_call.1} parent=11 // pred_check_branch
          %172 = sbr.rel (%p170) target = $region16
        $region15: #{tpu_custom_call.1} parent=11 // pred_region
          %s173 = smul.u32 2, %s23
          %s175 = ssub.s32 256, 256
          %176 = vsyncadd [#allocation8], %s175
          %s177 = smul.addr %s173, 128
          %s178 = scalar_lea.hbm %s1, %s177
          %s179 = sshll.u32 [#allocation7], 4
          %s180 = int_to_ptr.vmem [resolvable:$true] %s179
          %185 = dma.hbm_to_vmem [thread:$0]  %s178, 256, %s180, [#allocation8], 128, 128, 8
        $region16: #{tpu_custom_call.1} parent=11 // pred_fallthru
          _
      $region12: #{tpu_custom_call.1} parent=5 // pred_fallthru
        _
      %p186 = scmp.lt.s32.totalorder %s13, 2
      // Predicated region
      $region17: #{tpu_custom_call.1} parent=5 // pred_check
        %p187 = pneg %p186
      $region18: #{tpu_custom_call.1} parent=5 // pred_check_branch
        %189 = sbr.rel (%p187) target = $region20
      $region19: #{tpu_custom_call.1} parent=5 // pred_region
        // Predicated region
        $region21: #{tpu_custom_call.1} parent=19 // pred_check
          %p190 = pneg %p45
        $region22: #{tpu_custom_call.1} parent=19 // pred_check_branch
          %192 = sbr.rel (%p190) target = $region24
        $region23: #{tpu_custom_call.1} parent=19 // pred_region
          %s193 = sand.u32 %s13, 1
          %s194 = scalar_lea.sflag [#allocation6], %s193
          %s195 = sand.u32 %s35, 1
          %s196 = smul.addr %s195, 8
          %s197 = scalar_lea.vmem [#allocation5], %s196
          %s199 = ssub.s32 128, 128
          %200 = vsyncadd %s194, %s199
          %s201 = smul.addr %s20, 128
          %s202 = scalar_lea.hbm %s0, %s201
          %s204 = sshll.u32 %s197, 4
          %s205 = int_to_ptr.vmem [resolvable:$true] %s204
          %207 = dma.hbm_to_vmem [thread:$0]  %s202, 128, %s205, %s194
        $region24: #{tpu_custom_call.1} parent=19 // pred_fallthru
          _
        // Predicated region
        $region25: #{tpu_custom_call.1} parent=19 // pred_check
          %p208 = pneg %p123
        $region26: #{tpu_custom_call.1} parent=19 // pred_check_branch
          %210 = sbr.rel (%p208) target = $region28
        $region27: #{tpu_custom_call.1} parent=19 // pred_region
          %s211 = sand.u32 %s13, 1
          %s212 = scalar_lea.sflag [#allocation6], %s211
          %s213 = sand.u32 %s113, 1
          %s214 = smul.addr %s213, 8
          %s215 = scalar_lea.vmem [#allocation9], %s214
          %s216 = sadd.s32 %s20, 1
          %p217 = scmp.lt.s32.totalorder %s216, 0
          %s218 = ssub.s32 0, %s216
          %s219 = scalar_select %p217, %s218, %s216
          %s220 = sand.u32 %s219, 1
          %s221 = ssub.s32 0, %s220
          %s222 = scalar_select %p217, %s221, %s220
          %p223 = scmp.ne.s32.totalorder %s222, 0
          %p224 = scmp.lt.s32.totalorder %s222, 0
          %p225 = pnand %p224, %p223
          %p226 = pneg %p225
          %s227 = sadd.s32 %s222, 2
          %s228 = scalar_select %p226, %s227, %s222
          %s230 = ssub.s32 128, 128
          %231 = vsyncadd %s212, %s230
          %s232 = smul.addr %s228, 128
          %s233 = scalar_lea.hbm %s2, %s232
          %s235 = sshll.u32 %s215, 4
          %s236 = int_to_ptr.vmem [resolvable:$true] %s235
          %238 = dma.hbm_to_vmem [thread:$0]  %s233, 128, %s236, %s212
        $region28: #{tpu_custom_call.1} parent=19 // pred_fallthru
          _
      $region20: #{tpu_custom_call.1} parent=5 // pred_fallthru
        _
      %p239 = scmp.le.s32.totalorder 1, %s13
      %p240 = scmp.lt.s32.totalorder %s13, 3
      %p241 = pnand %p239, %p240
      %p242 = pneg %p241
      // Predicated region
      $region29: #{tpu_custom_call.1} parent=5 // pred_check
        _
      $region30: #{tpu_custom_call.1} parent=5 // pred_check_branch
        %244 = sbr.rel (%p241) target = $region32
      $region31: #{tpu_custom_call.1} parent=5 // pred_region
        %s245 = ssub.s32 %s13, 1
        %s246 = sand.u32 %s18, 1
        %s247 = scalar_lea.sflag [#allocation6], %s246
        %s248 = sand.u32 %s38, 1
        %s249 = smul.addr %s248, 8
        %s250 = scalar_lea.vmem [#allocation5], %s249
        // Predicated region
        $region33: #{tpu_custom_call.1} parent=31 // pred_check
          %p251 = pneg %p51
        $region34: #{tpu_custom_call.1} parent=31 // pred_check_branch
          %253 = sbr.rel (%p251) target = $region36
        $region35: #{tpu_custom_call.1} parent=31 // pred_region
          %254 = dma.done %s247, 128
        $region36: #{tpu_custom_call.1} parent=31 // pred_fallthru
          _
        // Predicated region
        $region37: #{tpu_custom_call.1} parent=31 // pred_check
          %p255 = pneg %p77
        $region38: #{tpu_custom_call.1} parent=31 // pred_check_branch
          %257 = sbr.rel (%p255) target = $region40
        $region39: #{tpu_custom_call.1} parent=31 // pred_region
          %258 = dma.done [#allocation8], 256
        $region40: #{tpu_custom_call.1} parent=31 // pred_fallthru
          _
        %s259 = sand.u32 %s18, 1
        %s260 = scalar_lea.sflag [#allocation6], %s259
        %s261 = sand.u32 %s116, 1
        %s262 = smul.addr %s261, 8
        %s263 = scalar_lea.vmem [#allocation9], %s262
        // Predicated region
        $region41: #{tpu_custom_call.1} parent=31 // pred_check
          %p264 = pneg %p129
        $region42: #{tpu_custom_call.1} parent=31 // pred_check_branch
          %266 = sbr.rel (%p264) target = $region44
        $region43: #{tpu_custom_call.1} parent=31 // pred_region
          %267 = dma.done %s260, 128
        $region44: #{tpu_custom_call.1} parent=31 // pred_fallthru
          _
        %s268 = sand.u32 %s18, 1
        %s269 = scalar_lea.sflag [#allocation6], %s268
        %s270 = sand.u32 %s38, 1
        %s271 = smul.addr %s270, 8
        %s272 = scalar_lea.vmem [#allocation5], %s271
        %p273 = pneg %p51
        %p274 = pneg %p48
        %p275 = pneg %p77
        %p276 = pneg %p74
        %s277 = sand.u32 %s18, 1
        %s278 = scalar_lea.sflag [#allocation6], %s277
        %s279 = sand.u32 %s116, 1
        %s280 = smul.addr %s279, 8
        %s281 = scalar_lea.vmem [#allocation9], %s280
        %p282 = pneg %p129
        %p283 = pneg %p126
        %p284 = pneg %p155
        %p285 = pneg %p152
        %p286 = scmp.lt.s32.totalorder %s22, 1
        %s287 = scalar_select %p286, %s22, 1
        %s288 = smul.addr %s287, 8
        %s289 = scalar_lea.vmem %s3, %s288
        %s290 = smul.u32 2, %s23
        %s291 = sadd.s32 %s22, 1
        %p292 = scmp.lt.s32.totalorder %s291, 0
        %s293 = ssub.s32 0, %s291
        %s294 = scalar_select %p292, %s293, %s291
        %s295 = sand.u32 %s294, 1
        %s296 = ssub.s32 0, %s295
        %s297 = scalar_select %p292, %s296, %s295
        %p298 = scmp.ne.s32.totalorder %s297, 0
        %p299 = scmp.lt.s32.totalorder %s297, 0
        %p300 = pnand %p299, %p298
        %p301 = pneg %p300
        %s302 = sadd.s32 %s297, 2
        %s303 = scalar_select %p301, %s302, %s297
        %p304 = scmp.lt.s32.totalorder %s22, 1
        %s305 = scalar_select %p304, %s22, 1
        %s306 = smul.addr %s305, 8
        %s307 = scalar_lea.vmem %s3, %s306
        %p308 = scmp.eq.s32.totalorder %s23, 0
        // Predicated region
        $region45: #{tpu_custom_call.1} parent=31 // pred_check
          %p309 = pneg %p308
        $region46: #{tpu_custom_call.1} parent=31 // pred_check_branch
          %311 = sbr.rel (%p309) target = $region48
        $region47: #{tpu_custom_call.1} parent=31 // pred_region
          %v312 = vld [vmem:[%s250] sm:$0xff]
          %v313 = vmul.f32 %v312, %v312
          %vm314 = vcmask 261120
          %v315 = vsel %vm314, %v313, 0.0
          %316 = vadd.xlane.f32.xlu0 %v315
          %v317 = vpop.xlane.xlu0 %316
          %vm318 = vcmp.gt.f32.partialorder %v317, 1e-24
          %v319 = vrsqrt.pop %v317
          %v320 = vsel %vm318, %v319, 1e+12
          %v321 = vmul.f32 %v312, %v320
          %v322 = vmul.f32 %v321, 2.0
          %323 = vst.msk [vmem:[#allocation2] sm:$0xff] %vm314, %v322
          %vm324 = vcmask 7168
          %325 = vst.msk [vmem:[#allocation3] sm:$0xff] %vm324, -inf
          %326 = vst.msk [vmem:[#allocation4] sm:$0xff] %vm324, 0.0
        $region48: #{tpu_custom_call.1} parent=31 // pred_fallthru
          _
        %v327 = vld [vmem:[#allocation2] sm:$0xff]
        %v328 = vld [vmem:[#allocation7] sm:$0xff]
        %v329 = vld [vmem:[#allocation7 + $0x8] sm:$0xff]
        %v330 = vmul.f32 %v328, %v328
        %v331 = vmul.f32 %v329, %v329
        %vm332 = vcmask 261120
        %v333 = vsel %vm332, %v330, 0.0
        %334 = vadd.xlane.f32.xlu0 %v333
        %v335 = vpop.xlane.xlu0 %334
        %v336 = vsel %vm332, %v331, 0.0
        %337 = vadd.xlane.f32.xlu0 %v336
        %v338 = vpop.xlane.xlu0 %337
        %vm339 = vcmp.gt.f32.partialorder %v335, 1e-24
        %vm340 = vcmp.gt.f32.partialorder %v338, 1e-24
        %v341 = vrsqrt.pop %v335
        %v342 = vrsqrt.pop %v338
        %v343 = vsel %vm339, %v341, 1e+12
        %v344 = vsel %vm340, %v342, 1e+12
        %v345 = vmul.f32 %v328, %v343
        %v346 = vmul.f32 %v329, %v344
        %v348 = vsel %vm332, %v327, 0
        %v351 = vsel %vm332, %v345, 0
        %v354 = vsel %vm332, %v346, 0
        %356 = vmatprep.subr.mxu0 0.0
        %357 = vmatpush1.xpose.msra.mxu0 0.0
        %358 = vmatprep.subr.mxu0 0.0
        %359 = vmatpush1.xpose.msra.mxu0 0.0
        %360 = vmatprep.subr.mxu0 0.0
        %361 = vmatpush1.xpose.msra.mxu0 0.0
        %362 = vmatprep.subr.mxu0 0.0
        %363 = vmatpush1.xpose.msra.mxu0 0.0
        %364 = vmatprep.subr.mxu0 0.0
        %365 = vmatpush1.xpose.msra.mxu0 0.0
        %366 = vmatprep.subr.mxu0 0.0
        %367 = vmatpush1.xpose.msra.mxu0 0.0
        %368 = vmatprep.subr.mxu0 0.0
        %369 = vmatpush1.xpose.msra.mxu0 0.0
        %370 = vmatprep.subr.mxu0 0.0
        %371 = vmatpush1.xpose.msra.mxu0 0.0
        %372 = vmatprep.subr.mxu0 0.0
        %373 = vmatpush1.xpose.msra.mxu0 0.0
        %374 = vmatprep.subr.mxu0 0.0
        %375 = vmatpush1.xpose.msra.mxu0 0.0
        %376 = vmatprep.subr.mxu0 0.0
        %377 = vmatpush1.xpose.msra.mxu0 0.0
        %378 = vmatprep.subr.mxu0 0.0
        %379 = vmatpush1.xpose.msra.mxu0 0.0
        %380 = vmatprep.subr.mxu0 0.0
        %381 = vmatpush1.xpose.msra.mxu0 0.0
        %382 = vmatprep.subr.mxu0 0.0
        %383 = vmatpush1.xpose.msra.mxu0 0.0
        %384 = vmatprep.subr.mxu0 0.0
        %385 = vmatpush1.xpose.msra.mxu0 %v354
        %386 = vmatprep.subr.mxu0 0.0
        %387 = vmatpush1.xpose.msra.mxu0 %v351
        %388 = vmatprep.subr.mxu0 0.0
        %389 = vmatpush2.xpose.msra.mxu0 0.0
        %390 = vmatprep.subr.mxu0 0.0
        %391 = vmatpush2.xpose.msra.mxu0 0.0
        %392 = vmatprep.subr.mxu0 0.0
        %393 = vmatpush2.xpose.msra.mxu0 0.0
        %394 = vmatprep.subr.mxu0 0.0
        %395 = vmatpush2.xpose.msra.mxu0 0.0
        %396 = vmatprep.subr.mxu0 0.0
        %397 = vmatpush2.xpose.msra.mxu0 0.0
        %398 = vmatprep.subr.mxu0 0.0
        %399 = vmatpush2.xpose.msra.mxu0 0.0
        %400 = vmatprep.subr.mxu0 0.0
        %401 = vmatpush2.xpose.msra.mxu0 0.0
        %402 = vmatprep.subr.mxu0 0.0
        %403 = vmatpush2.xpose.msra.mxu0 0.0
        %404 = vmatprep.subr.mxu0 0.0
        %405 = vmatpush2.xpose.msra.mxu0 0.0
        %406 = vmatprep.subr.mxu0 0.0
        %407 = vmatpush2.xpose.msra.mxu0 0.0
        %408 = vmatprep.subr.mxu0 0.0
        %409 = vmatpush2.xpose.msra.mxu0 0.0
        %410 = vmatprep.subr.mxu0 0.0
        %411 = vmatpush2.xpose.msra.mxu0 0.0
        %412 = vmatprep.subr.mxu0 0.0
        %413 = vmatpush2.xpose.msra.mxu0 0.0
        %414 = vmatprep.subr.mxu0 0.0
        %415 = vmatpush2.xpose.msra.mxu0 0.0
        %416 = vmatprep.subr.mxu0 0.0
        %417 = vmatpush2.xpose.msra.mxu0 0.0
        %418 = vmatprep.subr.mxu0 0.0
        %419 = vmatpush2.xpose.msra.mxu0 0.0
        %420 = vmatprep.mubr.f32.mxu0 0.0
        %421 = vmatmul.mubr.f32.gmra.mxu0 %v348
        %v422 = vpop.f32.mrf.mxu0
        %v423 = vadd.f32 0.0, %v422
        %v424 = vpop.f32.mrf.mxu0
        %425 = vdwg.mxu0
        %s426 = smul.u32 %s22, 8
        %v427 = vlaneseq
        %v428 = vshrl.u32 %v427, 7
        %v429 = vstv %s426
        %v430 = vadd.s32 %v429, %v428
        %s431 = smul.u32 %s23, 16
        %v432 = vlaneseq
        %v433 = vand.u32 %v432, 127
        %v434 = vstv %s431
        %v435 = vadd.s32 %v434, %v433
        %vm436 = vcmp.eq.s32.totalorder %v435, %v430
        %v437 = vsel %vm436, -1e+30, %v423
        %v438 = vld [vmem:[#allocation3] sm:$0xff]
        %vm439 = vcmask 130048
        %v440 = vsel %vm439, %v437, -inf
        %441 = vmax.xlane.f32.xlu0 %v440
        %v442 = vpop.xlane.xlu0 %441
        %v443 = vmax.f32 %v438, %v442
        %v444 = vsub.f32 %v438, %v443
        %v445 = vmul.f32 %v444, 1.442695
        %v446 = vpow.pop %v445
        %v447 = vld [vmem:[#allocation4] sm:$0xff]
        %v448 = vmul.f32 %v446, %v447
        %450 = vset.pattern.permute.xlu0 0
        %451 = vperm.xlu0 %450, %v443
        %v452 = vpop.permute.xlu0 %451
        %v454 = vsub.f32 %v437, %v452
        %v455 = vmul.f32 %v454, 1.442695
        %v456 = vpow.pop %v455
        %v457 = vsel %vm439, %v456, 0.0
        %458 = vadd.xlane.f32.xlu0 %v457
        %v459 = vpop.xlane.xlu0 %458
        %v460 = vadd.f32 %v448, %v459
        %vm461 = vcmask 7168
        %462 = vst.msk [vmem:[#allocation4] sm:$0xff] %vm461, %v460
        %463 = vst.msk [vmem:[#allocation3] sm:$0xff] %vm461, %v443
        // Predicated region
        $region49: #{tpu_custom_call.1} parent=31 // pred_check
          %p464 = pneg %p308
        $region50: #{tpu_custom_call.1} parent=31 // pred_check_branch
          %466 = sbr.rel (%p464) target = $region52
        $region51: #{tpu_custom_call.1} parent=31 // pred_region
          %v467 = vld [vmem:[%s263] sm:$0xff]
          %v468 = vmul.f32 %v467, %v467
          %v469 = vsel %vm332, %v468, 0.0
          %470 = vadd.xlane.f32.xlu0 %v469
          %v471 = vpop.xlane.xlu0 %470
          %vm472 = vcmp.gt.f32.partialorder %v471, 1e-24
          %v473 = vrsqrt.pop %v471
          %v474 = vsel %vm472, %v473, 1e+12
          %v475 = vmul.f32 %v467, %v474
          %v476 = vmul.f32 %v327, %v475
          %v477 = vsel %vm332, %v476, 0.0
          %478 = vadd.xlane.f32.xlu0 %v477
          %v479 = vpop.xlane.xlu0 %478
          %v480 = vld [vmem:[#allocation3] sm:$0xff]
          %v481 = vld [vmem:[#allocation4] sm:$0xff]
          %v482 = vlog2.pop %v481
          %v483 = vmul.f32 %v482, 0.6931472
          %v484 = vadd.f32 %v480, %v483
          %v485 = vsub.f32 %v484, %v479
          %486 = vst.msk [vmem:[%s307] sm:$0xff] %vm461, %v485
        $region52: #{tpu_custom_call.1} parent=31 // pred_fallthru
          _
        %p487 = scmp.lt.s32.totalorder %s22, 1
        %s488 = scalar_select %p487, %s22, 1
        %s489 = smul.addr %s488, 8
        %s490 = scalar_lea.vmem %s3, %s489
        // Predicated region
        $region53: #{tpu_custom_call.1} parent=31 // pred_check
          %p491 = pneg %p152
        $region54: #{tpu_custom_call.1} parent=31 // pred_check_branch
          %493 = sbr.rel (%p491) target = $region56
        $region55: #{tpu_custom_call.1} parent=31 // pred_region
          _
        $region56: #{tpu_custom_call.1} parent=31 // pred_fallthru
          _
      $region32: #{tpu_custom_call.1} parent=5 // pred_fallthru
        _
      %p494 = scmp.le.s32.totalorder 2, %s13
      // Predicated region
      $region57: #{tpu_custom_call.1} parent=5 // pred_check
        %p495 = pneg %p494
      $region58: #{tpu_custom_call.1} parent=5 // pred_check_branch
        %497 = sbr.rel (%p495) target = $region60
      $region59: #{tpu_custom_call.1} parent=5 // pred_region
        %s498 = ssub.s32 %s13, 2
        // Predicated region
        $region61: #{tpu_custom_call.1} parent=59 // pred_check
          %p499 = pneg %p158
        $region62: #{tpu_custom_call.1} parent=59 // pred_check_branch
          %501 = sbr.rel (%p499) target = $region64
        $region63: #{tpu_custom_call.1} parent=59 // pred_region
          %p502 = scmp.lt.s32.totalorder %s24, 1
          %s503 = scalar_select %p502, %s24, 1
          %s504 = smul.addr %s503, 8
          %s505 = scalar_lea.vmem %s3, %s504
        $region64: #{tpu_custom_call.1} parent=59 // pred_fallthru
          _
      $region60: #{tpu_custom_call.1} parent=5 // pred_fallthru
        _
    $region6: #{tpu_custom_call.1} parent=1 // loop_footer
      %s17 = sadd.s32 1, %s13
    $region7: #{tpu_custom_call.1} parent=1 // loop_footer_branch
      %12 = sbr.rel target = $region3
    $region8: #{tpu_custom_call.1} parent=1 // loop_exit
      _
    %506 = vsyncpa [#allocation6], 1
    %s507 = scalar_lea.sflag [#allocation6], 1
    %508 = vsyncpa %s507, 1
    %509 = vsyncpa [#allocation8], 1

</llo_original>
